<compile_context>
chip_gen: v7x
topology: tpu7x:2x2x1
jax: 0.10.0
libtpu: 0.0.40
codegen_flags: <defaults>
</compile_context>

<pallas_src>
import functools
import math

import jax
import jax.numpy as jnp
from jax.experimental import pallas as pl
from jax.experimental.pallas import tpu as pltpu

LN_EPS = 1e-5


def _round_up(n, q):
    return ((n + q - 1) // q) * q


def _block_diag(block, n):
    """n copies of `block` on the diagonal of an otherwise-zero matrix."""
    r, c = block.shape
    out = jnp.zeros((n * r, n * c), block.dtype)
    for j in range(n):
        out = out.at[j * r:(j + 1) * r, j * c:(j + 1) * c].set(block)
    return out


def _choose_pack(I, O, R, G, E):
    """Rows packed per 128-lane vreg row (keeps x lane-dense, fills gating lanes)."""
    if 128 % I != 0:
        # Lane-sparse fallback: block last dims equal the full array dims, so the
        # (8,128) BlockSpec constraint is satisfied via the full-array escape.
        return 1

    def mxu_tiles_per_row(p):
        t = lambda n: -(-n // 128)          # ceil(n / 128)
        return (t(p * I) * t(p * (R + G))                     # fused stage 1
                + t(p * G) * (2 * t(p * G) + t(E * p * R))    # var, denom, expert modes
                + t(p * R) * t(p * O)) / p                    # output mode

    pack = 128 // I
    # Grow PACK while gating intermediates under-fill a vreg row and the extra
    # block-diagonal zeros do not increase per-logical-row MXU tile cost.
    while (pack * G < 128 and pack * I < 512
           and mxu_tiles_per_row(2 * pack) <= mxu_tiles_per_row(pack) + 1e-9):
        pack *= 2
    return pack


def mumoe_kernel(x_ref, w1_ref, b1_ref, pool_ref, uexp_ref, wout_ref, o_ref, *,
                 nz, inv_d):
    """One row-tile of the fused MuMoE forward pass (PACK rows packed per vreg row).

    x_ref    : (TM, PACK*I)           bf16 packed input rows
    w1_ref   : (PACK*I, PACK*(R+G))   bf16 block-diag [CP input factor | LN-centered gate projs]
    b1_ref   : (1, PACK*R)            f32  folded input-mode bias (z lanes only)
    pool_ref : (PACK*G, PACK*G)       bf16 0/1 segment-sum matrix over d-lane gate groups
    uexp_ref : (PACK*G, E*PACK*R)     bf16 block-diag CP expert-mode factors
    wout_ref : (PACK*R, PACK*O)       bf16 block-diag CP output-mode factor
    o_ref    : (TM, PACK*O)           bf16 packed output rows
    nz       : static, PACK*R  (lane count of the CP-rank slice)
    inv_d    : static, 1/d     (expert-mode width)
    """
    x = x_ref[...]
    # Fused first stage: CP input mode + every (pre-centered) gating projection in one
    # MXU pass.  LN centering is linear, so it is folded into w1 in the wrapper.
    h = jnp.dot(x, w1_ref[...], preferred_element_type=jnp.float32)
    z = h[:, :nz] + b1_ref[...]         # (TM, PACK*R)  CP input mode (+ folded bias)
    gc = h[:, nz:]                      # (TM, PACK*G)  centered gate logits, d-lane segments

    # LayerNorm scale (elementwise_affine=False, bias=False) per d-lane segment, computed
    # with a bf16 MXU pooling matmul instead of XLU cross-lane reduces.
    pool = pool_ref[...]
    var = jnp.dot((gc * gc).astype(jnp.bfloat16), pool,
                  preferred_element_type=jnp.float32) * inv_d
    gn = gc * jax.lax.rsqrt(var + LN_EPS)

    # Gating activation (act) -- softmax per segment.  After no-affine LN over d lanes,
    # |gn| <= sqrt(d-1), so no max-subtraction is needed.
    # TODO(synk): default act=entmax comes from an external library; this instantiation
    # uses softmax (act is a constructor argument of the module).
    eg = jnp.exp(gn)
    denom = jnp.dot(eg.astype(jnp.bfloat16), pool, preferred_element_type=jnp.float32)
    a = eg * pl.reciprocal(denom, approx=True)

    # CP expert modes: all modes in a single bf16 matmul against the block-diagonal
    # factors, then multiply each mode's contribution into z.
    m = jnp.dot(a.astype(jnp.bfloat16), uexp_ref[...],
                preferred_element_type=jnp.float32)            # (TM, E*PACK*R)
    num_modes = m.shape[1] // nz
    for e in range(num_modes):
        z = z * m[:, e * nz:(e + 1) * nz]

    # CP output mode -> lane-dense bf16 store.
    o_ref[...] = jnp.dot(z.astype(jnp.bfloat16), wout_ref[...],
                         preferred_element_type=jnp.float32).astype(o_ref.dtype)


def mumoe_forward(x, projs, u_exp, w_in, b_in, w_out, *, tm=8192,
                  out_dtype=jnp.bfloat16):
    """x: (B, T, I) float32 -> (B, T, O) in `out_dtype` (bf16 by default to halve HBM writes).

    Assumes all expert modes share the same width d.
    # TODO(synk): the PyTorch module allows heterogeneous expert_dims; not supported here.
    # TODO(synk): second_dim>0 (two-layer MuMoE block with GELU) is not implemented.
    Call this under jax.jit so the (tiny) fused-weight assembly below is compiled/cached
    rather than dispatched op-by-op on every call.
    """
    B, T, I = x.shape
    E, d, R = u_exp.shape
    O = w_out.shape[1]
    assert projs.shape == (E, I, d)
    G = E * d
    rows = B * T

    PACK = _choose_pack(I, O, R, G, E)

    # ---- Build the fused / block-diagonal factors (tiny; cached under jit). ----
    # LayerNorm centering (subtract per-d-segment mean) is linear: fold it into the
    # gate projections so the kernel receives centered logits directly.
    seg_g = jnp.arange(G) // d
    pool_g = (seg_g[:, None] == seg_g[None, :]).astype(jnp.float32)          # (G, G)
    center = jnp.eye(G, dtype=jnp.float32) - pool_g / d
    projcat = jnp.concatenate([projs[e] for e in range(E)], axis=1)          # (I, G)
    projc = projcat @ center
    w1 = jnp.concatenate(
        [_block_diag(w_in, PACK), _block_diag(projc, PACK)], axis=1
    ).astype(jnp.bfloat16)                                                   # (PACK*I, PACK*(R+G))
    b1 = jnp.tile(b_in.reshape(1, R), (1, PACK)).astype(jnp.float32)         # (1, PACK*R)
    seg = jnp.arange(PACK * G) // d
    pool = (seg[:, None] == seg[None, :]).astype(jnp.bfloat16)               # (PACK*G, PACK*G)
    u_blocks = []
    for e in range(E):
        blk = jnp.zeros((G, R), jnp.float32).at[e * d:(e + 1) * d, :].set(u_exp[e])
        u_blocks.append(_block_diag(blk, PACK))
    uexp_bd = jnp.concatenate(u_blocks, axis=1).astype(jnp.bfloat16)         # (PACK*G, E*PACK*R)
    wout_bd = _block_diag(w_out, PACK).astype(jnp.bfloat16)                  # (PACK*R, PACK*O)

    # ---- Pad rows to the tile size, pack, cast the hot input path to bf16. ----
    row_quantum = 8 * PACK
    tm_eff = max(row_quantum, min(tm, _round_up(rows, row_quantum)))
    if rows >= 2 * row_quantum:
        # Keep >= 2 grid steps so the "parallel" axis can be split across the two
        # TensorCores on v7x (no-op cost on single-core v5e/v6e).
        tm_eff = min(tm_eff, _round_up((rows + 1) // 2, row_quantum))
    padded = _round_up(rows, tm_eff)
    xf = x.reshape(rows, I)
    if padded != rows:
        xf = jnp.concatenate([xf, jnp.zeros((padded - rows, I), xf.dtype)], axis=0)
    xp = xf.reshape(padded // PACK, PACK * I).astype(jnp.bfloat16)

    TM = tm_eff // PACK
    nz = PACK * R
    kernel = functools.partial(mumoe_kernel, nz=nz, inv_d=1.0 / d)

    # VMEM budget: double-buffered x / o tiles + resident fused weights + headroom.
    tile_bytes = TM * PACK * (I + O) * 2                       # bf16 in + bf16 out
    const_bytes = (w1.size + pool.size + uexp_bd.size + wout_bd.size) * 2 + b1.size * 4
    vmem_limit = int(min(max(2 * tile_bytes + 2 * const_bytes + (4 << 20), 16 << 20),
                         48 << 20))

    out = pl.pallas_call(
        kernel,
        out_shape=jax.ShapeDtypeStruct((padded // PACK, PACK * O), jnp.bfloat16),
        grid_spec=pltpu.PrefetchScalarGridSpec(
            num_scalar_prefetch=0,
            grid=(padded // tm_eff,),
            in_specs=[
                pl.BlockSpec((TM, PACK * I), lambda i: (i, 0)),   # packed x rows (tiled)
                pl.BlockSpec(w1.shape, lambda i: (0, 0)),         # fused stage-1 weight
                pl.BlockSpec(b1.shape, lambda i: (0, 0)),         # folded bias (z lanes)
                pl.BlockSpec(pool.shape, lambda i: (0, 0)),       # segment pooling matrix
                pl.BlockSpec(uexp_bd.shape, lambda i: (0, 0)),    # expert-mode factors
                pl.BlockSpec(wout_bd.shape, lambda i: (0, 0)),    # output-mode factor
            ],
            out_specs=pl.BlockSpec((TM, PACK * O), lambda i: (i, 0)),
        ),
        compiler_params=pltpu.CompilerParams(
            dimension_semantics=("parallel",),
            vmem_limit_bytes=vmem_limit),
    )(xp, w1, b1, pool, uexp_bd, wout_bd)

    return out.reshape(padded, O)[:rows].reshape(B, T, O).astype(out_dtype)


def mumoe_reference(x, projs, u_exp, w_in, b_in, w_out):
    """Pure-JAX (f32) reference of the same forward pass."""
    z = x @ w_in + b_in.reshape(1, -1)
    for e in range(projs.shape[0]):
        g = x @ projs[e]
        mu = g.mean(axis=-1, keepdims=True)
        var = ((g - mu) ** 2).mean(axis=-1, keepdims=True)
        gn = (g - mu) / jnp.sqrt(var + LN_EPS)
        a = jax.nn.softmax(gn, axis=-1)
        z = z * (a @ u_exp[e])
    return z @ w_out


def _bf16_round(a):
    return a.astype(jnp.bfloat16).astype(jnp.float32)


def _rel_err(y, y_ref):
    return float(jnp.max(jnp.abs(y - y_ref)) / (jnp.max(jnp.abs(y_ref)) + 1e-12))


if __name__ == "__main__":
    # Small shapes consistent with the module's forward.
    B, T = 2, 8                 # batch, tokens
    input_dim, output_dim = 32, 32
    expert_dims = [4, 4]        # two expert modes, 4 experts each
    rank = 8                    # CP rank
    E, d = len(expert_dims), expert_dims[0]

    key = jax.random.PRNGKey(0)
    kx, kp, ke, ki, kb, ko = jax.random.split(key, 6)

    x = jax.random.normal(kx, (B, T, input_dim), dtype=jnp.float32)
    # Deterministic parameter init (shapes from __init__).  The PyTorch module initializes
    # `projs` to zeros; we use random values so the gating path is numerically non-trivial.
    projs = 0.5 * jax.random.normal(kp, (E, input_dim, d), dtype=jnp.float32)
    u_exp = 0.5 * jax.random.normal(ke, (E, d, rank), dtype=jnp.float32)
    w_in = 0.5 * jax.random.normal(ki, (input_dim, rank), dtype=jnp.float32)
    b_in = 0.5 * jax.random.normal(kb, (1, rank), dtype=jnp.float32)       # use_bias
    w_out = 0.5 * jax.random.normal(ko, (rank, output_dim), dtype=jnp.float32)

    fwd = jax.jit(mumoe_forward, static_argnames=("tm", "out_dtype"))

    # Small call (single grid step; 16 rows padded to one packed tile).
    y = jax.block_until_ready(fwd(x, projs, u_exp, w_in, b_in, w_out))
    assert y.shape == (B, T, output_dim)
    y32 = y.astype(jnp.float32)

    # Faithful check: reference fed the same bf16-rounded inputs/weights the kernel
    # consumes (isolates kernel math from the deliberate bf16 HBM / MXU-operand casts).
    y_ref_bf = mumoe_reference(_bf16_round(x), _bf16_round(projs), _bf16_round(u_exp),
                               _bf16_round(w_in), b_in, _bf16_round(w_out))
    err_bf = _rel_err(y32, y_ref_bf)
    assert err_bf < 4e-2, f"rel err vs bf16-weight ref: {err_bf}"
    # Loose end-to-end check against the pure-f32 reference (covers all bf16 casts).
    y_ref = mumoe_reference(x, projs, u_exp, w_in, b_in, w_out)
    err_f32 = _rel_err(y32, y_ref)
    assert err_f32 < 8e-2, f"rel err vs f32 ref: {err_f32}"

    # Larger call: multiple grid steps + a ragged row count (exercises row padding and
    # the >=2-step megacore split).
    B2, T2 = 2, 1000            # rows = 2000 -> padded to 2048, grid = 2
    x2 = jax.random.normal(jax.random.PRNGKey(1), (B2, T2, input_dim), dtype=jnp.float32)
    y2 = jax.block_until_ready(fwd(x2, projs, u_exp, w_in, b_in, w_out))
    assert y2.shape == (B2, T2, output_dim)
    y2_ref_bf = mumoe_reference(_bf16_round(x2), _bf16_round(projs), _bf16_round(u_exp),
                                _bf16_round(w_in), b_in, _bf16_round(w_out))
    err2 = _rel_err(y2.astype(jnp.float32), y2_ref_bf)
    assert err2 < 4e-2, f"rel err (large): {err2}"

    print("KERNEL_OK")
</pallas_src>

<mosaic_0001>
module attributes {stable_mosaic.version = 11 : i64} {
  func.func @mumoe_kernel(%arg0: i32, %arg1: memref<8x256xbf16, #tpu.memory_space<vmem>>, %arg2: memref<256x128xbf16, #tpu.memory_space<vmem>>, %arg3: memref<1x64xf32, #tpu.memory_space<vmem>>, %arg4: memref<64x64xbf16, #tpu.memory_space<vmem>>, %arg5: memref<64x128xbf16, #tpu.memory_space<vmem>>, %arg6: memref<64x256xbf16, #tpu.memory_space<vmem>>, %arg7: memref<8x256xbf16, #tpu.memory_space<vmem>>) attributes {dimension_semantics = [#tpu.dimension_semantics<parallel>], iteration_bounds = array<i64: 1>, scalar_prefetch = 0 : i64, scratch_operands = 0 : i64, tpu.core_type = #tpu.core_type<tc>, window_params = [{transform_indices = @transform_0, window_bounds = array<i64: 8, 256>}, {pipeline_mode = #tpu.pipeline_mode<synchronous>, transform_indices = @transform_1, window_bounds = array<i64: 256, 128>}, {pipeline_mode = #tpu.pipeline_mode<synchronous>, transform_indices = @transform_2, window_bounds = array<i64: 1, 64>}, {pipeline_mode = #tpu.pipeline_mode<synchronous>, transform_indices = @transform_3, window_bounds = array<i64: 64, 64>}, {pipeline_mode = #tpu.pipeline_mode<synchronous>, transform_indices = @transform_4, window_bounds = array<i64: 64, 128>}, {pipeline_mode = #tpu.pipeline_mode<synchronous>, transform_indices = @transform_5, window_bounds = array<i64: 64, 256>}, {transform_indices = @transform_6, window_bounds = array<i64: 8, 256>}]} {
    %c0 = arith.constant 0 : index
    %c0_0 = arith.constant 0 : index
    %0 = vector.load %arg1[%c0, %c0_0] : memref<8x256xbf16, #tpu.memory_space<vmem>>, vector<8x256xbf16>
    %c0_1 = arith.constant 0 : index
    %c0_2 = arith.constant 0 : index
    %1 = vector.load %arg2[%c0_1, %c0_2] : memref<256x128xbf16, #tpu.memory_space<vmem>>, vector<256x128xbf16>
    %cst = arith.constant dense<0.000000e+00> : vector<8x128xf32>
    %2 = tpu.matmul %0, %1, %cst {dimension_numbers = #tpu.dot_dimension_numbers<[1], [0], [0], [1], [0, 0, 1, 1], [], []>} : vector<8x256xbf16>, vector<256x128xbf16>, vector<8x128xf32> -> vector<8x128xf32>
    %3 = vector.extract_strided_slice %2 {offsets = [0, 0], sizes = [8, 64], strides = [1, 1]} : vector<8x128xf32> to vector<8x64xf32>
    %c0_3 = arith.constant 0 : index
    %c0_4 = arith.constant 0 : index
    %4 = vector.load %arg3[%c0_3, %c0_4] : memref<1x64xf32, #tpu.memory_space<vmem>>, vector<1x64xf32>
    %5 = vector.broadcast %4 : vector<1x64xf32> to vector<8x64xf32>
    %6 = arith.addf %3, %5 : vector<8x64xf32>
    %7 = vector.extract_strided_slice %2 {offsets = [0, 64], sizes = [8, 64], strides = [1, 1]} : vector<8x128xf32> to vector<8x64xf32>
    %c0_5 = arith.constant 0 : index
    %c0_6 = arith.constant 0 : index
    %8 = vector.load %arg4[%c0_5, %c0_6] : memref<64x64xbf16, #tpu.memory_space<vmem>>, vector<64x64xbf16>
    %9 = arith.mulf %7, %7 : vector<8x64xf32>
    %10 = arith.truncf %9 : vector<8x64xf32> to vector<8x64xbf16>
    %cst_7 = arith.constant dense<0.000000e+00> : vector<8x64xf32>
    %11 = tpu.matmul %10, %8, %cst_7 {dimension_numbers = #tpu.dot_dimension_numbers<[1], [0], [0], [1], [0, 0, 1, 1], [], []>} : vector<8x64xbf16>, vector<64x64xbf16>, vector<8x64xf32> -> vector<8x64xf32>
    %cst_8 = arith.constant 2.500000e-01 : f32
    %12 = vector.broadcast %cst_8 : f32 to vector<8x64xf32>
    %13 = arith.mulf %11, %12 : vector<8x64xf32>
    %cst_9 = arith.constant 9.99999974E-6 : f32
    %14 = vector.broadcast %cst_9 : f32 to vector<8x64xf32>
    %15 = arith.addf %13, %14 : vector<8x64xf32>
    %16 = math.rsqrt %15 : vector<8x64xf32>
    %17 = arith.mulf %7, %16 : vector<8x64xf32>
    %18 = math.exp %17 : vector<8x64xf32>
    %19 = arith.truncf %18 : vector<8x64xf32> to vector<8x64xbf16>
    %cst_10 = arith.constant dense<0.000000e+00> : vector<8x64xf32>
    %20 = tpu.matmul %19, %8, %cst_10 {dimension_numbers = #tpu.dot_dimension_numbers<[1], [0], [0], [1], [0, 0, 1, 1], [], []>} : vector<8x64xbf16>, vector<64x64xbf16>, vector<8x64xf32> -> vector<8x64xf32>
    %21 = tpu.reciprocal %20 {approx = true} : vector<8x64xf32> -> vector<8x64xf32>
    %22 = arith.mulf %18, %21 : vector<8x64xf32>
    %23 = arith.truncf %22 : vector<8x64xf32> to vector<8x64xbf16>
    %c0_11 = arith.constant 0 : index
    %c0_12 = arith.constant 0 : index
    %24 = vector.load %arg5[%c0_11, %c0_12] : memref<64x128xbf16, #tpu.memory_space<vmem>>, vector<64x128xbf16>
    %cst_13 = arith.constant dense<0.000000e+00> : vector<8x128xf32>
    %25 = tpu.matmul %23, %24, %cst_13 {dimension_numbers = #tpu.dot_dimension_numbers<[1], [0], [0], [1], [0, 0, 1, 1], [], []>} : vector<8x64xbf16>, vector<64x128xbf16>, vector<8x128xf32> -> vector<8x128xf32>
    %26 = vector.extract_strided_slice %25 {offsets = [0, 0], sizes = [8, 64], strides = [1, 1]} : vector<8x128xf32> to vector<8x64xf32>
    %27 = arith.mulf %6, %26 : vector<8x64xf32>
    %28 = vector.extract_strided_slice %25 {offsets = [0, 64], sizes = [8, 64], strides = [1, 1]} : vector<8x128xf32> to vector<8x64xf32>
    %29 = arith.mulf %27, %28 : vector<8x64xf32>
    %30 = arith.truncf %29 : vector<8x64xf32> to vector<8x64xbf16>
    %c0_14 = arith.constant 0 : index
    %c0_15 = arith.constant 0 : index
    %31 = vector.load %arg6[%c0_14, %c0_15] : memref<64x256xbf16, #tpu.memory_space<vmem>>, vector<64x256xbf16>
    %cst_16 = arith.constant dense<0.000000e+00> : vector<8x256xf32>
    %32 = tpu.matmul %30, %31, %cst_16 {dimension_numbers = #tpu.dot_dimension_numbers<[1], [0], [0], [1], [0, 0, 1, 1], [], []>} : vector<8x64xbf16>, vector<64x256xbf16>, vector<8x256xf32> -> vector<8x256xf32>
    %33 = arith.truncf %32 : vector<8x256xf32> to vector<8x256xbf16>
    %c0_17 = arith.constant 0 : index
    %c0_18 = arith.constant 0 : index
    %34 = vector.load %arg7[%c0_17, %c0_18] : memref<8x256xbf16, #tpu.memory_space<vmem>>, vector<8x256xbf16>
    tpu.vector_store %arg7[%c0_17, %c0_18], %33 {strides = array<i32>} : memref<8x256xbf16, #tpu.memory_space<vmem>>, vector<8x256xbf16>,
    return
  }
  func.func @transform_0(%arg0: i32) -> (i32, i32) {
    %c0_i32 = arith.constant 0 : i32
    %c0_i32_0 = arith.constant 0 : i32
    return %arg0, %c0_i32 : i32, i32
  }
  func.func @transform_1(%arg0: i32) -> (i32, i32) {
    %c0_i32 = arith.constant 0 : i32
    %c0_i32_0 = arith.constant 0 : i32
    %c0_i32_1 = arith.constant 0 : i32
    return %c0_i32, %c0_i32_0 : i32, i32
  }
  func.func @transform_2(%arg0: i32) -> (i32, i32) {
    %c0_i32 = arith.constant 0 : i32
    %c0_i32_0 = arith.constant 0 : i32
    %c0_i32_1 = arith.constant 0 : i32
    return %c0_i32, %c0_i32_0 : i32, i32
  }
  func.func @transform_3(%arg0: i32) -> (i32, i32) {
    %c0_i32 = arith.constant 0 : i32
    %c0_i32_0 = arith.constant 0 : i32
    %c0_i32_1 = arith.constant 0 : i32
    return %c0_i32, %c0_i32_0 : i32, i32
  }
  func.func @transform_4(%arg0: i32) -> (i32, i32) {
    %c0_i32 = arith.constant 0 : i32
    %c0_i32_0 = arith.constant 0 : i32
    %c0_i32_1 = arith.constant 0 : i32
    return %c0_i32, %c0_i32_0 : i32, i32
  }
  func.func @transform_5(%arg0: i32) -> (i32, i32) {
    %c0_i32 = arith.constant 0 : i32
    %c0_i32_0 = arith.constant 0 : i32
    %c0_i32_1 = arith.constant 0 : i32
    return %c0_i32, %c0_i32_0 : i32, i32
  }
  func.func @transform_6(%arg0: i32) -> (i32, i32) {
    %c0_i32 = arith.constant 0 : i32
    %c0_i32_0 = arith.constant 0 : i32
    return %arg0, %c0_i32 : i32, i32
  }
}

</mosaic_0001>

<llo_original>
// kernel: mumoe_forward.1
$region0: #{mumoe_forward.1}
  #allocation0 [shape = 'u32[]', space=smem, size = 0x4, offset = 0x4, fixed_abs, tag = 'smem constant byte address 0x4 - core index']
  #allocation1 [shape = 'u32[144,128]{1,0:T(1,128)}', space=vmem, size = 0x12000, scoped, tag = 'internal scratch']
  %s0 = inlined_call_operand.vmem [shape: bf16[8,256], index: 0, kind: input, shape index: {}]
  %s1 = inlined_call_operand.vmem [shape: bf16[256,128], index: 1, kind: input, shape index: {}]
  %s2 = inlined_call_operand.vmem [shape: f32[1,64], index: 2, kind: input, shape index: {}]
  %s3 = inlined_call_operand.vmem [shape: bf16[64,64], index: 3, kind: input, shape index: {}]
  %s4 = inlined_call_operand.vmem [shape: bf16[64,128], index: 4, kind: input, shape index: {}]
  %s5 = inlined_call_operand.vmem [shape: bf16[64,256], index: 5, kind: input, shape index: {}]
  %s6 = inlined_call_operand.vmem [shape: bf16[8,256], index: 6, kind: output, shape index: {}]
  %s7 = sld [smem:[#allocation0]]
  $region34: #{mumoe_forward.1} parent=0
    _
  %s9 = ssub.s32 1, %s7
  %s10 = scalar_select 0, %s9, %s7
  // Predicated region
  $region2: #{mumoe_forward.1} parent=0 // pred_check
    _
  $region3: #{mumoe_forward.1} parent=0 // pred_check_branch
    %12 = sbr.rel (0) target = $region5
  $region4: #{mumoe_forward.1} parent=0 // pred_region
    _
  $region5: #{mumoe_forward.1} parent=0 // pred_fallthru
    _
  // Predicated region
  $region6: #{mumoe_forward.1} parent=0 // pred_check
    _
  $region7: #{mumoe_forward.1} parent=0 // pred_check_branch
    %14 = sbr.rel (0) target = $region9
  $region8: #{mumoe_forward.1} parent=0 // pred_region
    _
  $region9: #{mumoe_forward.1} parent=0 // pred_fallthru
    _
  // Predicated region
  $region10: #{mumoe_forward.1} parent=0 // pred_check
    _
  $region11: #{mumoe_forward.1} parent=0 // pred_check_branch
    %16 = sbr.rel (0) target = $region13
  $region12: #{mumoe_forward.1} parent=0 // pred_region
    _
  $region13: #{mumoe_forward.1} parent=0 // pred_fallthru
    _
  // Predicated region
  $region14: #{mumoe_forward.1} parent=0 // pred_check
    _
  $region15: #{mumoe_forward.1} parent=0 // pred_check_branch
    %18 = sbr.rel (0) target = $region17
  $region16: #{mumoe_forward.1} parent=0 // pred_region
    _
  $region17: #{mumoe_forward.1} parent=0 // pred_fallthru
    _
  // Predicated region
  $region18: #{mumoe_forward.1} parent=0 // pred_check
    _
  $region19: #{mumoe_forward.1} parent=0 // pred_check_branch
    %20 = sbr.rel (0) target = $region21
  $region20: #{mumoe_forward.1} parent=0 // pred_region
    _
  $region21: #{mumoe_forward.1} parent=0 // pred_fallthru
    _
  // Predicated region
  $region22: #{mumoe_forward.1} parent=0 // pred_check
    _
  $region23: #{mumoe_forward.1} parent=0 // pred_check_branch
    %22 = sbr.rel (0) target = $region25
  $region24: #{mumoe_forward.1} parent=0 // pred_region
    _
  $region25: #{mumoe_forward.1} parent=0 // pred_fallthru
    _
  %v24 = vld [vmem:[%s0] sm:$0xff]
  %v25 = vld [vmem:[%s1] sm:$0xf]
  %v26 = vld [vmem:[%s1 + $0x4] sm:$0xf]
  %v27 = vld [vmem:[%s1 + $0x8] sm:$0xf]
  %v28 = vld [vmem:[%s1 + $0xc] sm:$0xf]
  %v29 = vld [vmem:[%s1 + $0x10] sm:$0xf]
  %v30 = vld [vmem:[%s1 + $0x14] sm:$0xf]
  %v31 = vld [vmem:[%s1 + $0x18] sm:$0xf]
  %v32 = vld [vmem:[%s1 + $0x1c] sm:$0xf]
  %v33 = vld [vmem:[%s1 + $0x20] sm:$0xf]
  %v34 = vld [vmem:[%s1 + $0x24] sm:$0xf]
  %v35 = vld [vmem:[%s1 + $0x28] sm:$0xf]
  %v36 = vld [vmem:[%s1 + $0x2c] sm:$0xf]
  %v37 = vld [vmem:[%s1 + $0x30] sm:$0xf]
  %v38 = vld [vmem:[%s1 + $0x34] sm:$0xf]
  %v39 = vld [vmem:[%s1 + $0x38] sm:$0xf]
  %v40 = vld [vmem:[%s1 + $0x3c] sm:$0xf]
  %v41 = vld [vmem:[%s1 + $0x40] sm:$0xf]
  %v42 = vld [vmem:[%s1 + $0x44] sm:$0xf]
  %v43 = vld [vmem:[%s1 + $0x48] sm:$0xf]
  %v44 = vld [vmem:[%s1 + $0x4c] sm:$0xf]
  %v45 = vld [vmem:[%s1 + $0x50] sm:$0xf]
  %v46 = vld [vmem:[%s1 + $0x54] sm:$0xf]
  %v47 = vld [vmem:[%s1 + $0x58] sm:$0xf]
  %v48 = vld [vmem:[%s1 + $0x5c] sm:$0xf]
  %v49 = vld [vmem:[%s1 + $0x60] sm:$0xf]
  %v50 = vld [vmem:[%s1 + $0x64] sm:$0xf]
  %v51 = vld [vmem:[%s1 + $0x68] sm:$0xf]
  %v52 = vld [vmem:[%s1 + $0x6c] sm:$0xf]
  %v53 = vld [vmem:[%s1 + $0x70] sm:$0xf]
  %v54 = vld [vmem:[%s1 + $0x74] sm:$0xf]
  %v55 = vld [vmem:[%s1 + $0x78] sm:$0xf]
  %v56 = vld [vmem:[%s1 + $0x7c] sm:$0xf]
  %v58 = vunpack.c.l.b16 %v24
  %v59 = vunpack.c.h.b16 %v24
  %v60 = vpack.c.b16 %v58, %v58
  %v61 = vpack.c.b16 %v59, %v59
  %v96 = vunpack.c.l.b16 %v25
  %v97 = vunpack.c.l.b16 %v26
  %v98 = vunpack.c.l.b16 %v27
  %v99 = vunpack.c.l.b16 %v28
  %v100 = vunpack.c.l.b16 %v29
  %v101 = vunpack.c.l.b16 %v30
  %v102 = vunpack.c.l.b16 %v31
  %v103 = vunpack.c.l.b16 %v32
  %v104 = vunpack.c.l.b16 %v33
  %v105 = vunpack.c.l.b16 %v34
  %v106 = vunpack.c.l.b16 %v35
  %v107 = vunpack.c.l.b16 %v36
  %v108 = vunpack.c.l.b16 %v37
  %v109 = vunpack.c.l.b16 %v38
  %v110 = vunpack.c.l.b16 %v39
  %v111 = vunpack.c.l.b16 %v40
  %v112 = vunpack.c.l.b16 %v41
  %v113 = vunpack.c.l.b16 %v42
  %v114 = vunpack.c.l.b16 %v43
  %v115 = vunpack.c.l.b16 %v44
  %v116 = vunpack.c.l.b16 %v45
  %v117 = vunpack.c.l.b16 %v46
  %v118 = vunpack.c.l.b16 %v47
  %v119 = vunpack.c.l.b16 %v48
  %v120 = vunpack.c.l.b16 %v49
  %v121 = vunpack.c.l.b16 %v50
  %v122 = vunpack.c.l.b16 %v51
  %v123 = vunpack.c.l.b16 %v52
  %v124 = vunpack.c.l.b16 %v53
  %v125 = vunpack.c.l.b16 %v54
  %v126 = vunpack.c.l.b16 %v55
  %v127 = vunpack.c.l.b16 %v56
  %v128 = vpack.c.b16 %v97, %v96
  %v129 = vpack.c.b16 %v99, %v98
  %v130 = vpack.c.b16 %v101, %v100
  %v131 = vpack.c.b16 %v103, %v102
  %v132 = vpack.c.b16 %v105, %v104
  %v133 = vpack.c.b16 %v107, %v106
  %v134 = vpack.c.b16 %v109, %v108
  %v135 = vpack.c.b16 %v111, %v110
  %v136 = vpack.c.b16 %v113, %v112
  %v137 = vpack.c.b16 %v115, %v114
  %v138 = vpack.c.b16 %v117, %v116
  %v139 = vpack.c.b16 %v119, %v118
  %v140 = vpack.c.b16 %v121, %v120
  %v141 = vpack.c.b16 %v123, %v122
  %v142 = vpack.c.b16 %v125, %v124
  %v143 = vpack.c.b16 %v127, %v126
  %160 = vmatprep.subr.bf16.mxu0 0
  %161 = vmatpush1.bf16.msra.mxu0 %v128
  %162 = vmatprep.subr.bf16.mxu0 0
  %163 = vmatpush1.bf16.msra.mxu0 %v129
  %164 = vmatprep.subr.bf16.mxu0 0
  %165 = vmatpush1.bf16.msra.mxu0 %v130
  %166 = vmatprep.subr.bf16.mxu0 0
  %167 = vmatpush1.bf16.msra.mxu0 %v131
  %168 = vmatprep.subr.bf16.mxu0 0
  %169 = vmatpush1.bf16.msra.mxu0 %v132
  %170 = vmatprep.subr.bf16.mxu0 0
  %171 = vmatpush1.bf16.msra.mxu0 %v133
  %172 = vmatprep.subr.bf16.mxu0 0
  %173 = vmatpush1.bf16.msra.mxu0 %v134
  %174 = vmatprep.subr.bf16.mxu0 0
  %175 = vmatpush1.bf16.msra.mxu0 %v135
  %176 = vmatprep.subr.bf16.mxu0 0
  %177 = vmatpush1.bf16.msra.mxu0 %v136
  %178 = vmatprep.subr.bf16.mxu0 0
  %179 = vmatpush1.bf16.msra.mxu0 %v137
  %180 = vmatprep.subr.bf16.mxu0 0
  %181 = vmatpush1.bf16.msra.mxu0 %v138
  %182 = vmatprep.subr.bf16.mxu0 0
  %183 = vmatpush1.bf16.msra.mxu0 %v139
  %184 = vmatprep.subr.bf16.mxu0 0
  %185 = vmatpush1.bf16.msra.mxu0 %v140
  %186 = vmatprep.subr.bf16.mxu0 0
  %187 = vmatpush1.bf16.msra.mxu0 %v141
  %188 = vmatprep.subr.bf16.mxu0 0
  %189 = vmatpush1.bf16.msra.mxu0 %v142
  %190 = vmatprep.subr.bf16.mxu0 0
  %191 = vmatpush1.bf16.msra.mxu0 %v143
  %192 = vmatprep.mubr.bf16.mxu0 %v61
  %193 = vmatmul.mubr.bf16.gmra.mrb[0].mxu0 %v60
  %v194 = vpop.f32.mrb[0].mxu0
  %v195 = vadd.f32 0.0, %v194
  %v196 = vpop.f32.mrb[0].mxu0
  %v197 = vpop.f32.mrb[0].mxu0
  %v198 = vpop.f32.mrb[0].mxu0
  %199 = vdwg.mxu0
  %v200 = vld [vmem:[%s2] sm:$0x1]
  %v202 = vlaneseq
  %v203 = vshrl.u32 %v202, 7
  %v204 = vsub.s32 0, %v203
  %v205 = vrot.slane %v200, %v204
  %v207 = vadd.f32 %v195, %v205
  %v208 = vld [vmem:[%s3] sm:$0xf]
  %v209 = vld [vmem:[%s3 + $0x4] sm:$0xf]
  %v210 = vld [vmem:[%s3 + $0x8] sm:$0xf]
  %v211 = vld [vmem:[%s3 + $0xc] sm:$0xf]
  %v212 = vld [vmem:[%s3 + $0x10] sm:$0xf]
  %v213 = vld [vmem:[%s3 + $0x14] sm:$0xf]
  %v214 = vld [vmem:[%s3 + $0x18] sm:$0xf]
  %v215 = vld [vmem:[%s3 + $0x1c] sm:$0xf]
  %v216 = vmul.f32 %v195, %v195
  %v217 = vpack.c.bf16 %v216, %v216
  %219 = vrot.lane.b32.xlu0 %v217, 64
  %v220 = vpop.permute.xlu0 %219
  %v229 = vunpack.c.l.b16 %v208
  %v230 = vunpack.c.l.b16 %v209
  %v231 = vunpack.c.l.b16 %v210
  %v232 = vunpack.c.l.b16 %v211
  %v233 = vunpack.c.l.b16 %v212
  %v234 = vunpack.c.l.b16 %v213
  %v235 = vunpack.c.l.b16 %v214
  %v236 = vunpack.c.l.b16 %v215
  %v237 = vpack.c.b16 %v230, %v229
  %v238 = vpack.c.b16 %v232, %v231
  %v239 = vpack.c.b16 %v234, %v233
  %v240 = vpack.c.b16 %v236, %v235
  %vm245 = vcmask 523264
  %v247 = vsel %vm245, %v220, 0
  %249 = vmatprep.subr.bf16.mxu0 0
  %250 = vmatpush1.bf16.msra.mxu0 %v237
  %251 = vmatprep.subr.bf16.mxu0 0
  %252 = vmatpush1.bf16.msra.mxu0 %v238
  %253 = vmatprep.subr.bf16.mxu0 0
  %254 = vmatpush1.bf16.msra.mxu0 %v239
  %255 = vmatprep.subr.bf16.mxu0 0
  %256 = vmatpush1.bf16.msra.mxu0 %v240
  %257 = vmatprep.subr.bf16.mxu0 0
  %258 = vmatpush1.bf16.msra.mxu0 0
  %259 = vmatprep.subr.bf16.mxu0 0
  %260 = vmatpush1.bf16.msra.mxu0 0
  %261 = vmatprep.subr.bf16.mxu0 0
  %262 = vmatpush1.bf16.msra.mxu0 0
  %263 = vmatprep.subr.bf16.mxu0 0
  %264 = vmatpush1.bf16.msra.mxu0 0
  %265 = vmatprep.subr.bf16.mxu0 0
  %266 = vmatpush1.bf16.msra.mxu0 0
  %267 = vmatprep.subr.bf16.mxu0 0
  %268 = vmatpush1.bf16.msra.mxu0 0
  %269 = vmatprep.subr.bf16.mxu0 0
  %270 = vmatpush1.bf16.msra.mxu0 0
  %271 = vmatprep.subr.bf16.mxu0 0
  %272 = vmatpush1.bf16.msra.mxu0 0
  %273 = vmatprep.subr.bf16.mxu0 0
  %274 = vmatpush1.bf16.msra.mxu0 0
  %275 = vmatprep.subr.bf16.mxu0 0
  %276 = vmatpush1.bf16.msra.mxu0 0
  %277 = vmatprep.subr.bf16.mxu0 0
  %278 = vmatpush1.bf16.msra.mxu0 0
  %279 = vmatprep.subr.bf16.mxu0 0
  %280 = vmatpush1.bf16.msra.mxu0 0
  %281 = vmatprep.mubr.bf16.mxu0 0
  %282 = vmatmul.mubr.bf16.gmra.mrb[0].mxu0 %v247
  %v283 = vpop.f32.mrb[0].mxu0
  %v284 = vadd.f32 0.0, %v283
  %v285 = vpop.f32.mrb[0].mxu0
  %v286 = vpop.f32.mrb[0].mxu0
  %v287 = vpop.f32.mrb[0].mxu0
  %288 = vdwg.mxu0
  %v289 = vmul.f32 %v284, 0.25
  %v290 = vadd.f32 %v289, 1e-05
  %v291 = vrsqrt.pop %v290
  %293 = vrot.lane.b32.xlu0 %v291, 64
  %v294 = vpop.permute.xlu0 %293
  %v296 = vmul.f32 %v195, %v294
  %v297 = vmul.f32 %v296, 1.442695
  %v298 = vpow.pop %v297
  %v299 = vpack.c.bf16 %v298, %v298
  %301 = vrot.lane.b32.xlu0 %v299, 64
  %v302 = vpop.permute.xlu0 %301
  %v304 = vsel %vm245, %v302, 0
  %306 = vmatprep.subr.bf16.mxu0 0
  %307 = vmatpush1.bf16.msra.mxu0 %v237
  %308 = vmatprep.subr.bf16.mxu0 0
  %309 = vmatpush1.bf16.msra.mxu0 %v238
  %310 = vmatprep.subr.bf16.mxu0 0
  %311 = vmatpush1.bf16.msra.mxu0 %v239
  %312 = vmatprep.subr.bf16.mxu0 0
  %313 = vmatpush1.bf16.msra.mxu0 %v240
  %314 = vmatprep.subr.bf16.mxu0 0
  %315 = vmatpush1.bf16.msra.mxu0 0
  %316 = vmatprep.subr.bf16.mxu0 0
  %317 = vmatpush1.bf16.msra.mxu0 0
  %318 = vmatprep.subr.bf16.mxu0 0
  %319 = vmatpush1.bf16.msra.mxu0 0
  %320 = vmatprep.subr.bf16.mxu0 0
  %321 = vmatpush1.bf16.msra.mxu0 0
  %322 = vmatprep.subr.bf16.mxu0 0
  %323 = vmatpush1.bf16.msra.mxu0 0
  %324 = vmatprep.subr.bf16.mxu0 0
  %325 = vmatpush1.bf16.msra.mxu0 0
  %326 = vmatprep.subr.bf16.mxu0 0
  %327 = vmatpush1.bf16.msra.mxu0 0
  %328 = vmatprep.subr.bf16.mxu0 0
  %329 = vmatpush1.bf16.msra.mxu0 0
  %330 = vmatprep.subr.bf16.mxu0 0
  %331 = vmatpush1.bf16.msra.mxu0 0
  %332 = vmatprep.subr.bf16.mxu0 0
  %333 = vmatpush1.bf16.msra.mxu0 0
  %334 = vmatprep.subr.bf16.mxu0 0
  %335 = vmatpush1.bf16.msra.mxu0 0
  %336 = vmatprep.subr.bf16.mxu0 0
  %337 = vmatpush1.bf16.msra.mxu0 0
  %338 = vmatprep.mubr.bf16.mxu0 0
  %339 = vmatmul.mubr.bf16.gmra.mrb[0].mxu0 %v304
  %v340 = vpop.f32.mrb[0].mxu0
  %v341 = vadd.f32 0.0, %v340
  %v342 = vpop.f32.mrb[0].mxu0
  %v343 = vpop.f32.mrb[0].mxu0
  %v344 = vpop.f32.mrb[0].mxu0
  %345 = vdwg.mxu0
  %v346 = vrcp.pop %v341
  %348 = vrot.lane.b32.xlu0 %v346, 64
  %v349 = vpop.permute.xlu0 %348
  %v351 = vmul.f32 %v298, %v349
  %v352 = vpack.c.bf16 %v351, %v351
  %v353 = vld [vmem:[%s4] sm:$0xf]
  %v354 = vld [vmem:[%s4 + $0x4] sm:$0xf]
  %v355 = vld [vmem:[%s4 + $0x8] sm:$0xf]
  %v356 = vld [vmem:[%s4 + $0xc] sm:$0xf]
  %v357 = vld [vmem:[%s4 + $0x10] sm:$0xf]
  %v358 = vld [vmem:[%s4 + $0x14] sm:$0xf]
  %v359 = vld [vmem:[%s4 + $0x18] sm:$0xf]
  %v360 = vld [vmem:[%s4 + $0x1c] sm:$0xf]
  %362 = vrot.lane.b32.xlu0 %v352, 64
  %v363 = vpop.permute.xlu0 %362
  %v372 = vunpack.c.l.b16 %v353
  %v373 = vunpack.c.l.b16 %v354
  %v374 = vunpack.c.l.b16 %v355
  %v375 = vunpack.c.l.b16 %v356
  %v376 = vunpack.c.l.b16 %v357
  %v377 = vunpack.c.l.b16 %v358
  %v378 = vunpack.c.l.b16 %v359
  %v379 = vunpack.c.l.b16 %v360
  %v380 = vpack.c.b16 %v373, %v372
  %v381 = vpack.c.b16 %v375, %v374
  %v382 = vpack.c.b16 %v377, %v376
  %v383 = vpack.c.b16 %v379, %v378
  %v389 = vsel %vm245, %v363, 0
  %391 = vmatprep.subr.bf16.mxu0 0
  %392 = vmatpush1.bf16.msra.mxu0 %v380
  %393 = vmatprep.subr.bf16.mxu0 0
  %394 = vmatpush1.bf16.msra.mxu0 %v381
  %395 = vmatprep.subr.bf16.mxu0 0
  %396 = vmatpush1.bf16.msra.mxu0 %v382
  %397 = vmatprep.subr.bf16.mxu0 0
  %398 = vmatpush1.bf16.msra.mxu0 %v383
  %399 = vmatprep.subr.bf16.mxu0 0
  %400 = vmatpush1.bf16.msra.mxu0 0
  %401 = vmatprep.subr.bf16.mxu0 0
  %402 = vmatpush1.bf16.msra.mxu0 0
  %403 = vmatprep.subr.bf16.mxu0 0
  %404 = vmatpush1.bf16.msra.mxu0 0
  %405 = vmatprep.subr.bf16.mxu0 0
  %406 = vmatpush1.bf16.msra.mxu0 0
  %407 = vmatprep.subr.bf16.mxu0 0
  %408 = vmatpush1.bf16.msra.mxu0 0
  %409 = vmatprep.subr.bf16.mxu0 0
  %410 = vmatpush1.bf16.msra.mxu0 0
  %411 = vmatprep.subr.bf16.mxu0 0
  %412 = vmatpush1.bf16.msra.mxu0 0
  %413 = vmatprep.subr.bf16.mxu0 0
  %414 = vmatpush1.bf16.msra.mxu0 0
  %415 = vmatprep.subr.bf16.mxu0 0
  %416 = vmatpush1.bf16.msra.mxu0 0
  %417 = vmatprep.subr.bf16.mxu0 0
  %418 = vmatpush1.bf16.msra.mxu0 0
  %419 = vmatprep.subr.bf16.mxu0 0
  %420 = vmatpush1.bf16.msra.mxu0 0
  %421 = vmatprep.subr.bf16.mxu0 0
  %422 = vmatpush1.bf16.msra.mxu0 0
  %423 = vmatprep.mubr.bf16.mxu0 0
  %424 = vmatmul.mubr.bf16.gmra.mrb[0].mxu0 %v389
  %v425 = vpop.f32.mrb[0].mxu0
  %v426 = vadd.f32 0.0, %v425
  %v427 = vpop.f32.mrb[0].mxu0
  %v428 = vpop.f32.mrb[0].mxu0
  %v429 = vpop.f32.mrb[0].mxu0
  %430 = vdwg.mxu0
  %v431 = vmul.f32 %v207, %v426
  %433 = vrot.lane.b32.xlu0 %v426, 64
  %v434 = vpop.permute.xlu0 %433
  %v436 = vmul.f32 %v431, %v434
  %v437 = vpack.c.bf16 %v436, %v436
  %v438 = vld [vmem:[%s5] sm:$0xff]
  %v439 = vld [vmem:[%s5 + $0x8] sm:$0xff]
  %v440 = vld [vmem:[%s5 + $0x10] sm:$0xff]
  %v441 = vld [vmem:[%s5 + $0x18] sm:$0xff]
  %v442 = vld [vmem:[%s5 + $0x20] sm:$0xff]
  %v443 = vld [vmem:[%s5 + $0x28] sm:$0xff]
  %v444 = vld [vmem:[%s5 + $0x30] sm:$0xff]
  %v445 = vld [vmem:[%s5 + $0x38] sm:$0xff]
  %v454 = vunpack.c.l.b16 %v438
  %v455 = vunpack.c.h.b16 %v438
  %v456 = vunpack.c.l.b16 %v439
  %v457 = vunpack.c.h.b16 %v439
  %v458 = vunpack.c.l.b16 %v440
  %v459 = vunpack.c.h.b16 %v440
  %v460 = vunpack.c.l.b16 %v441
  %v461 = vunpack.c.h.b16 %v441
  %v462 = vunpack.c.l.b16 %v442
  %v463 = vunpack.c.h.b16 %v442
  %v464 = vunpack.c.l.b16 %v443
  %v465 = vunpack.c.h.b16 %v443
  %v466 = vunpack.c.l.b16 %v444
  %v467 = vunpack.c.h.b16 %v444
  %v468 = vunpack.c.l.b16 %v445
  %v469 = vunpack.c.h.b16 %v445
  %v470 = vpack.c.b16 %v456, %v454
  %v471 = vpack.c.b16 %v457, %v455
  %v472 = vpack.c.b16 %v460, %v458
  %v473 = vpack.c.b16 %v461, %v459
  %v474 = vpack.c.b16 %v464, %v462
  %v475 = vpack.c.b16 %v465, %v463
  %v476 = vpack.c.b16 %v468, %v466
  %v477 = vpack.c.b16 %v469, %v467
  %v487 = vsel %vm245, %v437, 0
  %489 = vmatprep.subr.bf16.mxu0 %v471
  %490 = vmatpush1.bf16.msra.mxu0 %v470
  %491 = vmatprep.subr.bf16.mxu0 %v473
  %492 = vmatpush1.bf16.msra.mxu0 %v472
  %493 = vmatprep.subr.bf16.mxu0 %v475
  %494 = vmatpush1.bf16.msra.mxu0 %v474
  %495 = vmatprep.subr.bf16.mxu0 %v477
  %496 = vmatpush1.bf16.msra.mxu0 %v476
  %497 = vmatprep.subr.bf16.mxu0 0
  %498 = vmatpush1.bf16.msra.mxu0 0
  %499 = vmatprep.subr.bf16.mxu0 0
  %500 = vmatpush1.bf16.msra.mxu0 0
  %501 = vmatprep.subr.bf16.mxu0 0
  %502 = vmatpush1.bf16.msra.mxu0 0
  %503 = vmatprep.subr.bf16.mxu0 0
  %504 = vmatpush1.bf16.msra.mxu0 0
  %505 = vmatprep.subr.bf16.mxu0 0
  %506 = vmatpush1.bf16.msra.mxu0 0
  %507 = vmatprep.subr.bf16.mxu0 0
  %508 = vmatpush1.bf16.msra.mxu0 0
  %509 = vmatprep.subr.bf16.mxu0 0
  %510 = vmatpush1.bf16.msra.mxu0 0
  %511 = vmatprep.subr.bf16.mxu0 0
  %512 = vmatpush1.bf16.msra.mxu0 0
  %513 = vmatprep.subr.bf16.mxu0 0
  %514 = vmatpush1.bf16.msra.mxu0 0
  %515 = vmatprep.subr.bf16.mxu0 0
  %516 = vmatpush1.bf16.msra.mxu0 0
  %517 = vmatprep.subr.bf16.mxu0 0
  %518 = vmatpush1.bf16.msra.mxu0 0
  %519 = vmatprep.subr.bf16.mxu0 0
  %520 = vmatpush1.bf16.msra.mxu0 0
  %521 = vmatprep.mubr.bf16.mxu0 0
  %522 = vmatmul.mubr.bf16.gmra.mrb[0].mxu0 %v487
  %v523 = vpop.f32.mrb[0].mxu0
  %v524 = vadd.f32 0.0, %v523
  %v525 = vpop.f32.mrb[0].mxu0
  %v526 = vadd.f32 0.0, %v525
  %v527 = vpop.f32.mrb[0].mxu0
  %v528 = vpop.f32.mrb[0].mxu0
  %529 = vdwg.mxu0
  %v530 = vpack.c.bf16 %v524, %v524
  %v531 = vpack.c.bf16 %v526, %v526
  %v534 = vunpack.c.l.b16 %v530
  %v535 = vunpack.c.l.b16 %v531
  %v536 = vpack.c.b16 %v535, %v534
  %538 = vst [vmem:[%s6] sm:$0xff] %v536
  // Predicated region
  $region26: #{mumoe_forward.1} parent=0 // pred_check
    _
  $region27: #{mumoe_forward.1} parent=0 // pred_check_branch
    %540 = sbr.rel (0) target = $region29
  $region28: #{mumoe_forward.1} parent=0 // pred_region
    _
  $region29: #{mumoe_forward.1} parent=0 // pred_fallthru
    _
  // Predicated region
  $region30: #{mumoe_forward.1} parent=0 // pred_check
    _
  $region31: #{mumoe_forward.1} parent=0 // pred_check_branch
    %542 = sbr.rel (0) target = $region33
  $region32: #{mumoe_forward.1} parent=0 // pred_region
    _
  $region33: #{mumoe_forward.1} parent=0 // pred_fallthru
    _

</llo_original>
